<compile_context>
chip_gen: v5e
topology: v5e:2x2
jax: 0.10.0
libtpu: 0.0.40
codegen_flags: <defaults>
</compile_context>

<pallas_src>
import math
import functools

import jax
import jax.numpy as jnp
from jax.experimental import pallas as pl
from jax.experimental.pallas import tpu as pltpu


def _embedding_gather_kernel(ids_ref, table_hbm, out_ref, gbuf, sem, *,
                             tn: int, vocab: int, scale_factor: float):
    # ids_ref:   (N_pad,) int32, SMEM (scalar-prefetched) -- drives the gather
    # table_hbm: (V, D) table left in HBM (memory_space=pl.ANY)
    # out_ref:   (TN, D) VMEM output tile (Pallas-pipelined writeback)
    # gbuf:      (2*TN, D) VMEM double-buffered gather landing zone
    # sem:       (2,) byte-counting DMA completion semaphores (one per slot)
    i = pl.program_id(0)
    nsteps = pl.num_programs(0)
    slot = i & 1

    def issue_gather(step, slot_):
        ids_base = step * tn
        buf_base = slot_ * tn

        @pl.loop(0, tn)
        def _(t):
            # Guard against dirty / padded ids (nn.Embedding would raise; clamp).
            idx = jnp.clip(ids_ref[ids_base + t], 0, vocab - 1)
            # DMA one table row (D floats) from HBM into row t of slot `slot_`.
            pltpu.make_async_copy(table_hbm.at[idx],
                                  gbuf.at[buf_base + t],
                                  sem.at[slot_]).start()

    # Prime the pipeline: the first grid step gathers its own rows.
    @pl.when(i == 0)
    def _():
        issue_gather(0, 0)

    # Prefetch the *next* tile's rows into the other slot before blocking on
    # the current one, hiding the gather latency of step i+1 behind this
    # step's wait + scale + output writeback.
    @pl.when(i + 1 < nsteps)
    def _():
        issue_gather(i + 1, 1 - slot)

    # Wait for all TN row copies of the current slot: DMA semaphores count
    # bytes and the (TN, D) half-buffer is exactly the sum of TN (D,) rows.
    cur = pl.multiple_of(slot * tn, tn)
    cur_view = gbuf.at[pl.ds(cur, tn)]
    pltpu.make_async_copy(cur_view, cur_view, sem.at[slot]).wait()

    rows = gbuf[pl.ds(cur, tn), :]
    if scale_factor != 1.0:
        rows = rows * jnp.asarray(scale_factor, rows.dtype)
    out_ref[...] = rows


def _round_up(x: int, m: int) -> int:
    return (x + m - 1) // m * m


def embeddings_forward(x, table, *, scale: bool, tn_max: int = 256):
    """x: int32 [B, S]; table: float32 [V, D]. Returns float32 [B, S, D]."""
    B, S = x.shape
    V, D = table.shape
    N = B * S

    # Large token tiles (multiple of 8 sublanes); pad N up to a multiple of TN
    # (pad ids -> row 0) and slice the result back down afterwards.
    TN = _round_up(min(tn_max, _round_up(N, 8)), 8)
    N_pad = _round_up(N, TN)

    scale_factor = float(math.sqrt(D)) if scale else 1.0

    ids = x.reshape(N).astype(jnp.int32)
    if N_pad != N:
        ids = jnp.concatenate([ids, jnp.zeros((N_pad - N,), jnp.int32)])

    kernel = functools.partial(
        _embedding_gather_kernel, tn=TN, vocab=V, scale_factor=scale_factor)

    out_flat = pl.pallas_call(
        kernel,
        out_shape=jax.ShapeDtypeStruct((N_pad, D), table.dtype),
        grid_spec=pltpu.PrefetchScalarGridSpec(
            num_scalar_prefetch=1,                    # ids -> SMEM
            grid=(N_pad // TN,),
            in_specs=[
                pl.BlockSpec(memory_space=pl.ANY),    # table stays in HBM
            ],
            out_specs=pl.BlockSpec((TN, D), lambda i, ids: (i, 0)),
            scratch_shapes=[
                pltpu.VMEM((2 * TN, D), table.dtype),  # double-buffered gather
                pltpu.SemaphoreType.DMA((2,)),         # one sem per slot
            ],
        ),
        compiler_params=pltpu.CompilerParams(
            # Cross-step prefetch carries state across grid iterations, so the
            # grid axis must run sequentially ("arbitrary", not megacore-split).
            dimension_semantics=("arbitrary",)),
    )(ids, table)

    return out_flat[:N].reshape(B, S, D)


def init_embedding_table(key, vocab_size, embedding_dim, padding_idx):
    # Deterministic stand-in for nn.Embedding default N(0,1) init, with the
    # padding_idx row zeroed (matching nn.Embedding(padding_idx=...)).
    table = jax.random.normal(key, (vocab_size, embedding_dim), dtype=jnp.float32)
    table = table.at[padding_idx].set(0.0)
    return table


if __name__ == "__main__":
    B, S = 2, 8
    vocab_size = 512
    embedding_dim = 128      # lane-dense output last dim (multiple of 128)
    padding_idx = 1

    key = jax.random.PRNGKey(0)
    k_tab, k_idx = jax.random.split(key)

    table = init_embedding_table(k_tab, vocab_size, embedding_dim, padding_idx)
    x = jax.random.randint(k_idx, (B, S), 0, vocab_size, dtype=jnp.int32)
    # ensure at least one padding token is exercised
    x = x.at[0, 0].set(padding_idx)

    def ref_fn(idx, scale):
        r = jnp.take(table, idx, axis=0)
        return r * math.sqrt(embedding_dim) if scale else r

    # (a) default tile size (single grid step at this toy size), with scaling
    out_a = jax.block_until_ready(embeddings_forward(x, table, scale=True))
    assert out_a.shape == (B, S, embedding_dim)
    assert jnp.allclose(out_a, ref_fn(x, True), atol=1e-5, rtol=1e-5)

    # (b) tiny tile (tn_max=8) => 2 grid steps: exercises the cross-step
    #     double-buffered prefetch path; no scaling
    out_b = jax.block_until_ready(
        embeddings_forward(x, table, scale=False, tn_max=8))
    assert out_b.shape == (B, S, embedding_dim)
    assert jnp.allclose(out_b, ref_fn(x, False), atol=1e-5, rtol=1e-5)

    print("KERNEL_OK")
</pallas_src>

<mosaic_0001>
module attributes {stable_mosaic.version = 11 : i64} {
  func.func @_embedding_gather_kernel(%arg0: i32, %arg1: memref<16xi32, #tpu.memory_space<smem>>, %arg2: memref<512x128xf32, #tpu.memory_space<any>>, %arg3: memref<16x128xf32, #tpu.memory_space<vmem>>, %arg4: memref<32x128xf32, #tpu.memory_space<vmem>>, %arg5: memref<2x!tpu.dma_semaphore, #tpu.memory_space<semaphore_mem>>) attributes {dimension_semantics = [#tpu.dimension_semantics<arbitrary>], iteration_bounds = array<i64: 1>, scalar_prefetch = 1 : i64, scratch_operands = 2 : i64, tpu.core_type = #tpu.core_type<tc>, window_params = [{}, {transform_indices = @transform_1, window_bounds = array<i64: 16, 128>}]} {
    %c1_i32 = arith.constant 1 : i32
    %0 = arith.andi %arg0, %c1_i32 : i32
    %c0_i32 = arith.constant 0 : i32
    %1 = arith.cmpi eq, %arg0, %c0_i32 : i32
    %2 = arith.extui %1 : i1 to i32
    %c0_i32_0 = arith.constant 0 : i32
    %3 = arith.cmpi ne, %2, %c0_i32_0 : i32
    scf.if %3 {
      %c0_i32_8 = arith.constant 0 : i32
      %c16_i32_9 = arith.constant 16 : i32
      %19 = arith.addi %c0_i32_8, %c16_i32_9 : i32
      %c1_i32_10 = arith.constant 1 : i32
      scf.for %arg6 = %c0_i32_8 to %19 step %c1_i32_10  : i32 {
        %c1_i32_12 = arith.constant 1 : i32
        %20 = arith.muli %arg6, %c1_i32_12 : i32
        %c0_i32_13 = arith.constant 0 : i32
        %21 = arith.addi %c0_i32_13, %20 : i32
        %c0_i32_14 = arith.constant 0 : i32
        %22 = arith.addi %c0_i32_14, %21 : i32
        %23 = arith.index_cast %22 : i32 to index
        %24 = memref.load %arg1[%23] : memref<16xi32, #tpu.memory_space<smem>>
        %c0_i32_15 = arith.constant 0 : i32
        %c511_i32 = arith.constant 511 : i32
        %25 = arith.maxsi %c0_i32_15, %24 : i32
        %26 = arith.minsi %c511_i32, %25 : i32
        %c0_i32_16 = arith.constant 0 : i32
        %27 = arith.addi %c0_i32_16, %21 : i32
        %c0_i32_17 = arith.constant 0 : i32
        %c0_i32_18 = arith.constant 0 : i32
        %28 = tpu.memref_slice %arg2[%26, %c0_i32_18] : memref<512x128xf32, #tpu.memory_space<any>> -> memref<1x128xf32, #tpu.memory_space<any>>
        %29 = tpu.memref_squeeze %28 : memref<1x128xf32, #tpu.memory_space<any>> -> memref<128xf32, #tpu.memory_space<any>>
        %c0_i32_19 = arith.constant 0 : i32
        %30 = tpu.memref_slice %arg4[%27, %c0_i32_19] : memref<32x128xf32, #tpu.memory_space<vmem>> -> memref<1x128xf32, #tpu.memory_space<vmem>>
        %31 = tpu.memref_squeeze %30 : memref<1x128xf32, #tpu.memory_space<vmem>> -> memref<128xf32, #tpu.memory_space<vmem>>
        %32 = tpu.memref_slice %arg5[%c0_i32_17] : memref<2x!tpu.dma_semaphore, #tpu.memory_space<semaphore_mem>> -> memref<1x!tpu.dma_semaphore, #tpu.memory_space<semaphore_mem>>
        %33 = tpu.memref_squeeze %32 : memref<1x!tpu.dma_semaphore, #tpu.memory_space<semaphore_mem>> -> memref<!tpu.dma_semaphore, #tpu.memory_space<semaphore_mem>>
        tpu.enqueue_dma source(%29 : memref<128xf32, #tpu.memory_space<any>>) target(%31 : memref<128xf32, #tpu.memory_space<vmem>>) target_semaphore(%33 : memref<!tpu.dma_semaphore, #tpu.memory_space<semaphore_mem>>)
      }
      %c16_i32_11 = arith.constant 16 : i32
    } else {
    }
    %c1_i32_1 = arith.constant 1 : i32
    %4 = arith.addi %arg0, %c1_i32_1 : i32
    %c1_i32_2 = arith.constant 1 : i32
    %5 = arith.cmpi slt, %4, %c1_i32_2 : i32
    %6 = arith.extui %5 : i1 to i32
    %c0_i32_3 = arith.constant 0 : i32
    %7 = arith.cmpi ne, %6, %c0_i32_3 : i32
    scf.if %7 {
      %c1_i32_8 = arith.constant 1 : i32
      %19 = arith.addi %arg0, %c1_i32_8 : i32
      %c1_i32_9 = arith.constant 1 : i32
      %20 = arith.subi %c1_i32_9, %0 : i32
      %c16_i32_10 = arith.constant 16 : i32
      %21 = arith.muli %19, %c16_i32_10 : i32
      %c16_i32_11 = arith.constant 16 : i32
      %22 = arith.muli %20, %c16_i32_11 : i32
      %c0_i32_12 = arith.constant 0 : i32
      %c16_i32_13 = arith.constant 16 : i32
      %23 = arith.addi %c0_i32_12, %c16_i32_13 : i32
      %c1_i32_14 = arith.constant 1 : i32
      scf.for %arg6 = %c0_i32_12 to %23 step %c1_i32_14  : i32 {
        %c1_i32_16 = arith.constant 1 : i32
        %24 = arith.muli %arg6, %c1_i32_16 : i32
        %c0_i32_17 = arith.constant 0 : i32
        %25 = arith.addi %c0_i32_17, %24 : i32
        %26 = arith.addi %21, %25 : i32
        %27 = arith.index_cast %26 : i32 to index
        %28 = memref.load %arg1[%27] : memref<16xi32, #tpu.memory_space<smem>>
        %c0_i32_18 = arith.constant 0 : i32
        %c511_i32 = arith.constant 511 : i32
        %29 = arith.maxsi %c0_i32_18, %28 : i32
        %30 = arith.minsi %c511_i32, %29 : i32
        %31 = arith.addi %22, %25 : i32
        %c0_i32_19 = arith.constant 0 : i32
        %32 = tpu.memref_slice %arg2[%30, %c0_i32_19] : memref<512x128xf32, #tpu.memory_space<any>> -> memref<1x128xf32, #tpu.memory_space<any>>
        %33 = tpu.memref_squeeze %32 : memref<1x128xf32, #tpu.memory_space<any>> -> memref<128xf32, #tpu.memory_space<any>>
        %c0_i32_20 = arith.constant 0 : i32
        %34 = tpu.memref_slice %arg4[%31, %c0_i32_20] : memref<32x128xf32, #tpu.memory_space<vmem>> -> memref<1x128xf32, #tpu.memory_space<vmem>>
        %35 = tpu.memref_squeeze %34 : memref<1x128xf32, #tpu.memory_space<vmem>> -> memref<128xf32, #tpu.memory_space<vmem>>
        %36 = tpu.memref_slice %arg5[%20] : memref<2x!tpu.dma_semaphore, #tpu.memory_space<semaphore_mem>> -> memref<1x!tpu.dma_semaphore, #tpu.memory_space<semaphore_mem>>
        %37 = tpu.memref_squeeze %36 : memref<1x!tpu.dma_semaphore, #tpu.memory_space<semaphore_mem>> -> memref<!tpu.dma_semaphore, #tpu.memory_space<semaphore_mem>>
        tpu.enqueue_dma source(%33 : memref<128xf32, #tpu.memory_space<any>>) target(%35 : memref<128xf32, #tpu.memory_space<vmem>>) target_semaphore(%37 : memref<!tpu.dma_semaphore, #tpu.memory_space<semaphore_mem>>)
      }
      %c16_i32_15 = arith.constant 16 : i32
    } else {
    }
    %c16_i32 = arith.constant 16 : i32
    %8 = arith.muli %0, %c16_i32 : i32
    %9 = tpu.assume_multiple %8, 16 : i32
    %c0_i32_4 = arith.constant 0 : i32
    %10 = tpu.memref_slice %arg4[%9, %c0_i32_4] : memref<32x128xf32, #tpu.memory_space<vmem>> -> memref<16x128xf32, #tpu.memory_space<vmem>>
    %c0_i32_5 = arith.constant 0 : i32
    %11 = tpu.memref_slice %arg4[%9, %c0_i32_5] : memref<32x128xf32, #tpu.memory_space<vmem>> -> memref<16x128xf32, #tpu.memory_space<vmem>>
    %12 = tpu.memref_slice %arg5[%0] : memref<2x!tpu.dma_semaphore, #tpu.memory_space<semaphore_mem>> -> memref<1x!tpu.dma_semaphore, #tpu.memory_space<semaphore_mem>>
    %13 = tpu.memref_squeeze %12 : memref<1x!tpu.dma_semaphore, #tpu.memory_space<semaphore_mem>> -> memref<!tpu.dma_semaphore, #tpu.memory_space<semaphore_mem>>
    tpu.wait_dma2 semaphore(%13 : memref<!tpu.dma_semaphore, #tpu.memory_space<semaphore_mem>>) src(%10 : memref<16x128xf32, #tpu.memory_space<vmem>>) dst(%11 : memref<16x128xf32, #tpu.memory_space<vmem>>)
    %14 = arith.index_cast %9 : i32 to index
    %c0 = arith.constant 0 : index
    %15 = vector.load %arg4[%14, %c0] : memref<32x128xf32, #tpu.memory_space<vmem>>, vector<16x128xf32>
    %cst = arith.constant 11.3137083 : f32
    %16 = vector.broadcast %cst : f32 to vector<16x128xf32>
    %17 = arith.mulf %15, %16 : vector<16x128xf32>
    %c0_6 = arith.constant 0 : index
    %c0_7 = arith.constant 0 : index
    %18 = vector.load %arg3[%c0_6, %c0_7] : memref<16x128xf32, #tpu.memory_space<vmem>>, vector<16x128xf32>
    tpu.vector_store %arg3[%c0_6, %c0_7], %17 {strides = array<i32>} : memref<16x128xf32, #tpu.memory_space<vmem>>, vector<16x128xf32>,
    return
  }
  func.func @transform_1(%arg0: i32, %arg1: memref<16xi32, #tpu.memory_space<smem>>) -> (i32, i32) {
    %c0_i32 = arith.constant 0 : i32
    %c0_i32_0 = arith.constant 0 : i32
    return %arg0, %c0_i32 : i32, i32
  }
}

</mosaic_0001>

<llo_original>
// kernel: tpu_custom_call.1
$region0: #{tpu_custom_call.1}
  #allocation0 [shape = 'u32[]', space=smem, size = 0x4, offset = 0x4, fixed_abs, tag = 'smem constant byte address 0x4 - core index']
  #allocation1 [shape = 'u32[72,128]{1,0:T(1,128)}', space=vmem, size = 0x9000, scoped, tag = 'internal scratch']
  #allocation2 [shape = 'f32[32,128]{1,0:T(8,128)}', space=vmem, size = 0x4000, scoped, tag = 'scratch operand']
  #allocation3 [shape = 's32[2]{0}', space=sflag, size = 0x8, scoped, tag = 'scratch operand']
  #allocation4 [shape = 's32[1]{0}', space=sflag, size = 0x4, scoped, tag = 'scoped memory for tpu_custom_call.1']
  #allocation5 [shape = 'u8[512]{0}', space=smem, size = 0x200, scoped, tag = 'prefetched SMEM operand 0']
  #allocation8 [shape = 's32[]', space=sflag, size = 0x4, offset = 0, fixed_abs, tag = 'sflag constant byte address 0x0 - dummy sync flag']
  #allocation9 [shape = 's32[]', space=sflag, size = 0x4, offset = 0, fixed_abs, tag = 'sflag constant byte address 0x0 - dummy sync flag']
  #allocation10 [shape = 'u32[]', space=smem, size = 0x4, offset = 0x44, fixed_abs, tag = 'smem constant byte address 0x44 - assertion arg 0']
  #allocation11 [shape = 'u32[]', space=smem, size = 0x4, offset = 0x48, fixed_abs, tag = 'smem constant byte address 0x48 - assertion arg 1']
  #allocation12 [shape = 's32[]', space=sflag, size = 0x4, offset = 0, fixed_abs, tag = 'sflag constant byte address 0x0 - dummy sync flag']
  #allocation13 [shape = 's32[]', space=sflag, size = 0x4, offset = 0, fixed_abs, tag = 'sflag constant byte address 0x0 - dummy sync flag']
  %s0 = inlined_call_operand.hbm [shape: s32[16], index: 0, kind: input, shape index: {}]
  %s1 = inlined_call_operand.hbm [shape: f32[512,128], index: 1, kind: input, shape index: {}]
  %s2 = inlined_call_operand.hbm [shape: f32[16,128], index: 2, kind: output, shape index: {}]
  %s3 = sld [smem:[#allocation0]]
  $region40: #{tpu_custom_call.1} parent=0
    _
  %s5 = ssub.s32 1, %s3
  %s6 = scalar_select 0, %s5, %s3
  %s8 = sshll.u32 %s0, 4
  %s9 = int_to_ptr.hbm [resolvable:$true] %s8
  %11 = dma.hbm_to_smem %s9, 16, [#allocation5], [#allocation4]
  %13 = dma.done [#allocation4], 16
  %14 = sfence
  $region1: #{tpu_custom_call.1} parent=0
    #allocation6 [shape = 'u8[8192]{0}', space=vmem, size = 0x2000, scoped, tag = 'output window, operand 0, single buffered']
    #allocation7 [shape = 's32[1]{0}', space=sflag, size = 0x4, scoped, tag = 'scoped memory for tpu_custom_call.1']
    %15 = vsyncpa [#allocation7], 0
    %s16 = sand.u32 0, 1
    %p17 = scmp.eq.s32.totalorder 0, 0
    // Predicated region
    $region2: #{tpu_custom_call.1} parent=1 // pred_check
      %p18 = pneg %p17
    $region3: #{tpu_custom_call.1} parent=1 // pred_check_branch
      %20 = sbr.rel (%p18) target = $region5
    $region4: #{tpu_custom_call.1} parent=1 // pred_region
      loop: start=0, step=1, limit=16
      $region6: #{tpu_custom_call.1} parent=4 // loop_pre_header
        _
      $region7: #{tpu_custom_call.1} parent=4 // loop_header
        %s22 = sphi 0, %s26
        %p23 = scmp.ge.s32.totalorder %s22, 16
      $region8: #{tpu_custom_call.1} parent=4 // loop_header_branch
        %25 = sbr.rel (%p23) target = $region12
      $region9: #{tpu_custom_call.1} parent=4 // loop_body
        %s27 = sld [smem:[#allocation5 + %s22]]
        %p28 = scmp.gt.s32.totalorder %s27, 0
        %s29 = scalar_select %p28, %s27, 0
        %p30 = scmp.lt.s32.totalorder %s29, 511
        %s31 = scalar_select %p30, %s29, 511
        %s32 = scalar_lea.hbm %s1, %s31
        %s33 = scalar_lea.vmem [#allocation2], %s22
        // Predicated region
        $region13: #{tpu_custom_call.1} parent=9 // pred_check
          _
        $region14: #{tpu_custom_call.1} parent=9 // pred_check_branch
          %35 = sbr.rel target = $region16
        $region15: #{tpu_custom_call.1} parent=9 // pred_region
          %36 = sst [smem:[#allocation10]] [#allocation9]
          %37 = sst [smem:[#allocation11]] [#allocation8]
        $region16: #{tpu_custom_call.1} parent=9 // pred_fallthru
          _
        %39 = shalt.err (0)
        %s41 = sshll.u32 %s32, 4
        %s42 = int_to_ptr.hbm [resolvable:$true] %s41
        %s43 = sshll.u32 %s33, 4
        %s44 = int_to_ptr.vmem [resolvable:$true] %s43
        %46 = dma.hbm_to_vmem [thread:$0]  %s42, 16, %s44, [#allocation3]
      $region10: #{tpu_custom_call.1} parent=4 // loop_footer
        %s26 = sadd.s32 1, %s22
      $region11: #{tpu_custom_call.1} parent=4 // loop_footer_branch
        %21 = sbr.rel target = $region7
      $region12: #{tpu_custom_call.1} parent=4 // loop_exit
        _
    $region5: #{tpu_custom_call.1} parent=1 // pred_fallthru
      _
    %s47 = sadd.s32 0, 1
    %p48 = scmp.lt.s32.totalorder %s47, 1
    // Predicated region
    $region17: #{tpu_custom_call.1} parent=1 // pred_check
      %p49 = pneg %p48
    $region18: #{tpu_custom_call.1} parent=1 // pred_check_branch
      %51 = sbr.rel (%p49) target = $region20
    $region19: #{tpu_custom_call.1} parent=1 // pred_region
      %s52 = ssub.s32 1, %s16
      %s53 = smul.u32 %s47, 16
      %s54 = smul.u32 %s52, 16
      loop: start=0, step=1, limit=16
      $region21: #{tpu_custom_call.1} parent=19 // loop_pre_header
        _
      $region22: #{tpu_custom_call.1} parent=19 // loop_header
        %s56 = sphi 0, %s60
        %p57 = scmp.ge.s32.totalorder %s56, 16
      $region23: #{tpu_custom_call.1} parent=19 // loop_header_branch
        %59 = sbr.rel (%p57) target = $region27
      $region24: #{tpu_custom_call.1} parent=19 // loop_body
        %s61 = sadd.s32 %s53, %s56
        %s62 = sld [smem:[#allocation5 + %s61]]
        %p63 = scmp.gt.s32.totalorder %s62, 0
        %s64 = scalar_select %p63, %s62, 0
        %p65 = scmp.lt.s32.totalorder %s64, 511
        %s66 = scalar_select %p65, %s64, 511
        %s67 = sadd.s32 %s54, %s56
        %s68 = scalar_lea.hbm %s1, %s66
        %s69 = scalar_lea.vmem [#allocation2], %s67
        %s70 = scalar_lea.sflag [#allocation3], %s52
        // Predicated region
        $region28: #{tpu_custom_call.1} parent=24 // pred_check
          _
        $region29: #{tpu_custom_call.1} parent=24 // pred_check_branch
          %72 = sbr.rel target = $region31
        $region30: #{tpu_custom_call.1} parent=24 // pred_region
          %73 = sst [smem:[#allocation10]] [#allocation13]
          %74 = sst [smem:[#allocation11]] [#allocation12]
        $region31: #{tpu_custom_call.1} parent=24 // pred_fallthru
          _
        %76 = shalt.err (0)
        %s78 = sshll.u32 %s68, 4
        %s79 = int_to_ptr.hbm [resolvable:$true] %s78
        %s80 = sshll.u32 %s69, 4
        %s81 = int_to_ptr.vmem [resolvable:$true] %s80
        %83 = dma.hbm_to_vmem [thread:$0]  %s79, 16, %s81, %s70
      $region25: #{tpu_custom_call.1} parent=19 // loop_footer
        %s60 = sadd.s32 1, %s56
      $region26: #{tpu_custom_call.1} parent=19 // loop_footer_branch
        %55 = sbr.rel target = $region22
      $region27: #{tpu_custom_call.1} parent=19 // loop_exit
        _
    $region20: #{tpu_custom_call.1} parent=1 // pred_fallthru
      _
    %s84 = smul.u32 %s16, 16
    %s85 = scalar_lea.vmem [#allocation2], %s84
    %s86 = scalar_lea.sflag [#allocation3], %s16
    %s87 = smul.u32 16, 1
    %s88 = sshll.u32 %s87, 4
    %89 = dma.done %s86, %s88
    %v90 = vld [vmem:[%s85] sm:$0xff]
    %v91 = vld [vmem:[%s85 + $0x8] sm:$0xff]
    %v92 = vmul.f32 %v90, 11.313708
    %v93 = vmul.f32 %v91, 11.313708
    %94 = vst [vmem:[#allocation6] sm:$0xff] %v92
    %95 = vst [vmem:[#allocation6 + $0x8] sm:$0xff] %v93
    // Predicated region
    $region32: #{tpu_custom_call.1} parent=1 // pred_check
      _
    $region33: #{tpu_custom_call.1} parent=1 // pred_check_branch
      %97 = sbr.rel (0) target = $region35
    $region34: #{tpu_custom_call.1} parent=1 // pred_region
      %99 = vsyncadd [#allocation7], 0
      %s100 = sshll.u32 [#allocation6], 4
      %s101 = int_to_ptr.vmem [resolvable:$true] %s100
      %s102 = sshll.u32 %s2, 4
      %s103 = int_to_ptr.hbm [resolvable:$true] %s102
      %108 = dma.vmem_to_hbm [thread:$0]  %s101, 256, %s103, [#allocation7], 128, 128, 8
    $region35: #{tpu_custom_call.1} parent=1 // pred_fallthru
      _
    // Predicated region
    $region36: #{tpu_custom_call.1} parent=1 // pred_check
      _
    $region37: #{tpu_custom_call.1} parent=1 // pred_check_branch
      %110 = sbr.rel (0) target = $region39
    $region38: #{tpu_custom_call.1} parent=1 // pred_region
      %112 = dma.done [#allocation7], 256
    $region39: #{tpu_custom_call.1} parent=1 // pred_fallthru
      _
    %113 = vsyncpa [#allocation7], 1
  %114 = vsyncmov [#allocation3]
  %s115 = vpop.sfrf %114
  %p116 = scmp.eq.s32.totalorder %s115, 0
  %p117 = pneg %p116
  %119 = shalt.err (%p117)
  %s120 = scalar_lea.sflag [#allocation3], 1
  %121 = vsyncmov %s120
  %s122 = vpop.sfrf %121
  %p123 = scmp.eq.s32.totalorder %s122, 0
  %p124 = pneg %p123
  %126 = shalt.err (%p124)

</llo_original>
